<compile_context>
chip_gen: v7x
topology: tpu7x:2x2x1
jax: 0.10.0
libtpu: 0.0.40
codegen_flags: <defaults>
</compile_context>

<pallas_src>
import jax
import jax.numpy as jnp
from jax.experimental import pallas as pl
from jax.experimental.pallas import tpu as pltpu

BN_EPS = 1e-5


# ---------------------------------------------------------------------------
# Helpers
# ---------------------------------------------------------------------------
def _round_up(n, m):
    return (n + m - 1) // m * m


def _pad_to(a, shape):
    pads = [(0, s - d) for d, s in zip(a.shape, shape)]
    return jnp.pad(a, pads) if any(p for _, p in pads) else a


def _tpu_budget():
    """Return (scoped vmem_limit_bytes, min parallel grid steps) for this chip."""
    kind = ""
    try:
        kind = (jax.devices()[0].device_kind or "").lower()
    except Exception:
        pass
    is_v7 = ("v7" in kind) or ("7x" in kind)

    vmem_capacity = None
    try:
        info = pltpu.get_tpu_info()
        vmem_capacity = getattr(info, "vmem_capacity_bytes", None)
    except Exception:
        vmem_capacity = None
    if vmem_capacity is None:
        vmem_capacity = (64 if is_v7 else 128) * 1024 * 1024

    vmem_limit = int(vmem_capacity * 3 // 4)   # headroom for internal scratch
    min_steps = 2 if is_v7 else 1              # v7x: 2 TCs want >= 2 parallel steps
    return vmem_limit, min_steps


def _choose_tile(B, in_f, t_dim, out_f, vmem_limit, min_steps, want=1024):
    """Largest 128-multiple feature tile whose working set fits the VMEM budget."""
    out128 = _round_up(out_f, 128)
    best = 128
    cand = 128
    top = max(128, min(want, out128))
    while cand <= top:
        out_pad = _round_up(out_f, cand)
        if (min_steps > 1 and out128 >= min_steps * 128
                and out_pad // cand < min_steps):
            break  # would starve one TensorCore on v7x
        # stage-1 working set (bytes): resident bf16 x/t, double-buffered bf16
        # weight tiles, double-buffered bf16 h output tile, packed f32 vectors.
        s1 = (2 * B * (in_f + t_dim) * 2
              + 2 * (in_f + t_dim) * cand * 2
              + 2 * B * cand * 2
              + 2 * 4 * cand * 4)
        # stage-2 working set: resident bf16 h, double-buffered bf16 w2 column
        # tile, double-buffered f32 output tile, packed f32 vectors.
        s2 = (2 * B * out_pad * 2
              + 2 * out_pad * cand * 2
              + 2 * B * cand * 4
              + 2 * 3 * cand * 4)
        if max(s1, s2) <= int(vmem_limit * 0.8):
            best = cand
        cand += 128
    return best


def _batchnorm_train(h, gamma, beta):
    # BatchNorm1d training mode: per-feature stats over the full (untiled)
    # batch axis, biased variance, two-pass (numerically safe) formula.
    mean = jnp.mean(h, axis=0, keepdims=True)
    centered = h - mean
    var = jnp.mean(centered * centered, axis=0, keepdims=True)
    return centered * jax.lax.rsqrt(var + BN_EPS) * gamma + beta


# ---------------------------------------------------------------------------
# Stage 1: h = bnorm1(relu(fc1(x))) + relu(time_mlp(t)), tiled over features.
# ---------------------------------------------------------------------------
def _stage1_kernel(x_ref, t_ref, w1_ref, wt_ref, vec_ref, h_ref):
    # vec_ref rows: 0 = b1, 1 = bt, 2 = gamma1, 3 = beta1 (f32).
    vec = vec_ref[...]
    h = jnp.dot(x_ref[...], w1_ref[...], preferred_element_type=jnp.float32)
    h = jnp.maximum(h + vec[0:1, :], 0.0)
    h = _batchnorm_train(h, vec[2:3, :], vec[3:4, :])

    temb = jnp.dot(t_ref[...], wt_ref[...], preferred_element_type=jnp.float32)
    temb = jnp.maximum(temb + vec[1:2, :], 0.0)

    h_ref[...] = (h + temb).astype(h_ref.dtype)        # bf16 store


# ---------------------------------------------------------------------------
# Stage 2: out = bnorm2(relu(fc2(h))); h is fully K-resident (bf16).
# ---------------------------------------------------------------------------
def _stage2_kernel(h_ref, w2_ref, vec_ref, o_ref):
    # vec_ref rows: 0 = b2, 1 = gamma2, 2 = beta2 (f32).
    vec = vec_ref[...]
    a = jnp.dot(h_ref[...], w2_ref[...], preferred_element_type=jnp.float32)
    a = jnp.maximum(a + vec[0:1, :], 0.0)
    o_ref[...] = _batchnorm_train(a, vec[1:2, :], vec[2:3, :]).astype(o_ref.dtype)


# ---------------------------------------------------------------------------
# Wrapper
# ---------------------------------------------------------------------------
def mlp_block_forward(x, t, params, *, tile_n=None):
    """x: (B, in_features) f32, t: (B, time_emb_dim) f32 -> (B, out_features) f32."""
    B, in_f = x.shape
    t_dim = t.shape[1]
    out_f = params["w1"].shape[1]

    vmem_limit, min_steps = _tpu_budget()
    if tile_n is None:
        tile_n = _choose_tile(B, in_f, t_dim, out_f, vmem_limit, min_steps)
    tile_n = max(128, (tile_n // 128) * 128)
    out_pad = _round_up(out_f, tile_n)
    n_tiles = out_pad // tile_n

    # bf16 MXU operands; f32 accumulation inside the kernels; biases and BN
    # affine stay f32, packed one array per stage (single DMA per grid step).
    xb = x.astype(jnp.bfloat16)
    tb = t.astype(jnp.bfloat16)
    w1 = _pad_to(params["w1"].astype(jnp.bfloat16), (in_f, out_pad))
    wt = _pad_to(params["wt"].astype(jnp.bfloat16), (t_dim, out_pad))
    w2 = _pad_to(params["w2"].astype(jnp.bfloat16), (out_pad, out_pad))
    vec1 = _pad_to(
        jnp.concatenate(
            [params["b1"], params["bt"], params["g1"], params["be1"]], axis=0
        ).astype(jnp.float32),
        (4, out_pad))
    vec2 = _pad_to(
        jnp.concatenate(
            [params["b2"], params["g2"], params["be2"]], axis=0
        ).astype(jnp.float32),
        (3, out_pad))

    # ---- stage 1: grid over feature tiles, bf16 output ---------------------
    cost1 = pl.CostEstimate(
        flops=int(2 * B * out_pad * (in_f + t_dim)),
        transcendentals=int(out_pad),
        bytes_accessed=int(2 * B * (in_f + t_dim) + 2 * out_pad * (in_f + t_dim)
                           + 4 * 4 * out_pad + 2 * B * out_pad))
    h = pl.pallas_call(
        _stage1_kernel,
        out_shape=jax.ShapeDtypeStruct((B, out_pad), jnp.bfloat16),
        grid=(n_tiles,),
        in_specs=[
            pl.BlockSpec((B, in_f), lambda j: (0, 0)),
            pl.BlockSpec((B, t_dim), lambda j: (0, 0)),
            pl.BlockSpec((in_f, tile_n), lambda j: (0, j)),
            pl.BlockSpec((t_dim, tile_n), lambda j: (0, j)),
            pl.BlockSpec((4, tile_n), lambda j: (0, j)),
        ],
        out_specs=pl.BlockSpec((B, tile_n), lambda j: (0, j)),
        compiler_params=pltpu.CompilerParams(
            dimension_semantics=("parallel",),
            vmem_limit_bytes=vmem_limit),
        cost_estimate=cost1,
    )(xb, tb, w1, wt, vec1)

    # ---- stage 2: grid over output feature tiles, h fully K-resident -------
    cost2 = pl.CostEstimate(
        flops=int(2 * B * out_pad * out_pad),
        transcendentals=int(out_pad),
        bytes_accessed=int(2 * B * out_pad + 2 * out_pad * out_pad
                           + 3 * 4 * out_pad + 4 * B * out_pad))
    out = pl.pallas_call(
        _stage2_kernel,
        out_shape=jax.ShapeDtypeStruct((B, out_pad), jnp.float32),
        grid=(n_tiles,),
        in_specs=[
            pl.BlockSpec((B, out_pad), lambda j: (0, 0)),      # resident h
            pl.BlockSpec((out_pad, tile_n), lambda j: (0, j)),  # streaming w2
            pl.BlockSpec((3, tile_n), lambda j: (0, j)),
        ],
        out_specs=pl.BlockSpec((B, tile_n), lambda j: (0, j)),
        compiler_params=pltpu.CompilerParams(
            dimension_semantics=("parallel",),
            vmem_limit_bytes=vmem_limit),
        cost_estimate=cost2,
    )(h, w2, vec2)

    return out[:, :out_f]


# ---------------------------------------------------------------------------
# Params / reference
# ---------------------------------------------------------------------------
def init_params(key, in_features, out_features, time_emb_dim):
    """PyTorch-style uniform(-1/sqrt(fan_in), 1/sqrt(fan_in)) init.

    Linear weights stored pre-transposed as (in, out) in bf16 (the kernels
    accumulate in f32); biases and BN affine in f32, shape (1, out).
    """
    ks = jax.random.split(key, 6)

    def linear(kw, kb, fan_in, fan_out):
        bound = 1.0 / jnp.sqrt(jnp.float32(fan_in))
        w = jax.random.uniform(kw, (fan_in, fan_out), jnp.float32, -bound, bound)
        b = jax.random.uniform(kb, (1, fan_out), jnp.float32, -bound, bound)
        return w.astype(jnp.bfloat16), b

    w1, b1 = linear(ks[0], ks[1], in_features, out_features)
    wt, bt = linear(ks[2], ks[3], time_emb_dim, out_features)
    w2, b2 = linear(ks[4], ks[5], out_features, out_features)

    ones = jnp.ones((1, out_features), jnp.float32)
    zeros = jnp.zeros((1, out_features), jnp.float32)

    return dict(
        w1=w1, b1=b1, wt=wt, bt=bt, w2=w2, b2=b2,
        g1=ones, be1=zeros, g2=ones, be2=zeros,
    )


def reference_forward(x, t, p):
    """Pure-JAX reference with identical numerics (bf16 MXU operands, f32 acc)."""
    def dot(a, w):
        return jnp.dot(a.astype(jnp.bfloat16), w, preferred_element_type=jnp.float32)

    def bn(h, g, b):
        m = jnp.mean(h, axis=0, keepdims=True)
        c = h - m
        v = jnp.mean(c * c, axis=0, keepdims=True)
        return c * jax.lax.rsqrt(v + BN_EPS) * g + b

    h = bn(jnp.maximum(dot(x, p["w1"]) + p["b1"], 0.0), p["g1"], p["be1"])
    temb = jnp.maximum(dot(t, p["wt"]) + p["bt"], 0.0)
    h = (h + temb).astype(jnp.bfloat16)   # mirrors the bf16 inter-stage store
    return bn(jnp.maximum(dot(h, p["w2"]) + p["b2"], 0.0), p["g2"], p["be2"])


if __name__ == "__main__":
    # Small demo shapes; OUT_F deliberately not a multiple of 128 so the
    # pad-up-to-tile path is exercised.
    B, IN_F, OUT_F, T_DIM = 16, 32, 200, 16

    key = jax.random.PRNGKey(0)
    kx, kt, kp = jax.random.split(key, 3)
    x = jax.random.normal(kx, (B, IN_F), jnp.float32)
    t = jax.random.normal(kt, (B, T_DIM), jnp.float32)
    params = init_params(kp, IN_F, OUT_F, T_DIM)

    ref = reference_forward(x, t, params)

    # 1) Forced 128-wide tiles -> multi-step grids on both stages.
    out_small = jax.block_until_ready(mlp_block_forward(x, t, params, tile_n=128))
    assert out_small.shape == (B, OUT_F)
    err_small = float(jnp.max(jnp.abs(out_small - ref)))
    assert jnp.allclose(out_small, ref, atol=2e-3, rtol=2e-3), f"max_err={err_small}"

    # 2) Auto (generation/batch-aware) tile selection.
    out_auto = jax.block_until_ready(mlp_block_forward(x, t, params))
    assert out_auto.shape == (B, OUT_F)
    err_auto = float(jnp.max(jnp.abs(out_auto - ref)))
    assert jnp.allclose(out_auto, ref, atol=2e-3, rtol=2e-3), f"max_err={err_auto}"

    print("KERNEL_OK")
</pallas_src>

<mosaic_0001>
module attributes {stable_mosaic.version = 11 : i64} {
  func.func @_stage1_kernel(%arg0: i32, %arg1: memref<16x32xbf16, #tpu.memory_space<vmem>>, %arg2: memref<16x16xbf16, #tpu.memory_space<vmem>>, %arg3: memref<32x128xbf16, #tpu.memory_space<vmem>>, %arg4: memref<16x128xbf16, #tpu.memory_space<vmem>>, %arg5: memref<4x128xf32, #tpu.memory_space<vmem>>, %arg6: memref<16x128xbf16, #tpu.memory_space<vmem>>) attributes {dimension_semantics = [#tpu.dimension_semantics<parallel>], iteration_bounds = array<i64: 2>, scalar_prefetch = 0 : i64, scratch_operands = 0 : i64, tpu.core_type = #tpu.core_type<tc>, window_params = [{pipeline_mode = #tpu.pipeline_mode<synchronous>, transform_indices = @transform_0, window_bounds = array<i64: 16, 32>}, {pipeline_mode = #tpu.pipeline_mode<synchronous>, transform_indices = @transform_1, window_bounds = array<i64: 16, 16>}, {transform_indices = @transform_2, window_bounds = array<i64: 32, 128>}, {transform_indices = @transform_3, window_bounds = array<i64: 16, 128>}, {transform_indices = @transform_4, window_bounds = array<i64: 4, 128>}, {transform_indices = @transform_5, window_bounds = array<i64: 16, 128>}]} {
    %c0 = arith.constant 0 : index
    %c0_0 = arith.constant 0 : index
    %0 = vector.load %arg5[%c0, %c0_0] : memref<4x128xf32, #tpu.memory_space<vmem>>, vector<4x128xf32>
    %c0_1 = arith.constant 0 : index
    %c0_2 = arith.constant 0 : index
    %1 = vector.load %arg1[%c0_1, %c0_2] : memref<16x32xbf16, #tpu.memory_space<vmem>>, vector<16x32xbf16>
    %c0_3 = arith.constant 0 : index
    %c0_4 = arith.constant 0 : index
    %2 = vector.load %arg3[%c0_3, %c0_4] : memref<32x128xbf16, #tpu.memory_space<vmem>>, vector<32x128xbf16>
    %cst = arith.constant dense<0.000000e+00> : vector<16x128xf32>
    %3 = tpu.matmul %1, %2, %cst {dimension_numbers = #tpu.dot_dimension_numbers<[1], [0], [0], [1], [0, 0, 1, 1], [], []>} : vector<16x32xbf16>, vector<32x128xbf16>, vector<16x128xf32> -> vector<16x128xf32>
    %4 = vector.extract_strided_slice %0 {offsets = [0, 0], sizes = [1, 128], strides = [1, 1]} : vector<4x128xf32> to vector<1x128xf32>
    %5 = vector.broadcast %4 : vector<1x128xf32> to vector<16x128xf32>
    %6 = arith.addf %3, %5 : vector<16x128xf32>
    %cst_5 = arith.constant 0.000000e+00 : f32
    %7 = vector.broadcast %cst_5 : f32 to vector<16x128xf32>
    %8 = arith.maximumf %6, %7 : vector<16x128xf32>
    %9 = vector.extract_strided_slice %0 {offsets = [2, 0], sizes = [1, 128], strides = [1, 1]} : vector<4x128xf32> to vector<1x128xf32>
    %10 = vector.extract_strided_slice %0 {offsets = [3, 0], sizes = [1, 128], strides = [1, 1]} : vector<4x128xf32> to vector<1x128xf32>
    %cst_6 = arith.constant dense<0.000000e+00> : vector<128xf32>
    %11 = vector.multi_reduction <add>, %8, %cst_6 [0] : vector<16x128xf32> to vector<128xf32>
    %12 = vector.shape_cast %11 : vector<128xf32> to vector<1x128xf32>
    %cst_7 = arith.constant 1.600000e+01 : f32
    %13 = vector.broadcast %cst_7 : f32 to vector<1x128xf32>
    %14 = arith.divf %12, %13 : vector<1x128xf32>
    %15 = vector.broadcast %14 : vector<1x128xf32> to vector<16x128xf32>
    %16 = arith.subf %8, %15 : vector<16x128xf32>
    %17 = arith.mulf %16, %16 : vector<16x128xf32>
    %cst_8 = arith.constant dense<0.000000e+00> : vector<128xf32>
    %18 = vector.multi_reduction <add>, %17, %cst_8 [0] : vector<16x128xf32> to vector<128xf32>
    %19 = vector.shape_cast %18 : vector<128xf32> to vector<1x128xf32>
    %cst_9 = arith.constant 1.600000e+01 : f32
    %20 = vector.broadcast %cst_9 : f32 to vector<1x128xf32>
    %21 = arith.divf %19, %20 : vector<1x128xf32>
    %cst_10 = arith.constant 9.99999974E-6 : f32
    %22 = vector.broadcast %cst_10 : f32 to vector<1x128xf32>
    %23 = arith.addf %21, %22 : vector<1x128xf32>
    %24 = math.rsqrt %23 : vector<1x128xf32>
    %25 = vector.broadcast %24 : vector<1x128xf32> to vector<16x128xf32>
    %26 = arith.mulf %16, %25 : vector<16x128xf32>
    %27 = vector.broadcast %9 : vector<1x128xf32> to vector<16x128xf32>
    %28 = arith.mulf %26, %27 : vector<16x128xf32>
    %29 = vector.broadcast %10 : vector<1x128xf32> to vector<16x128xf32>
    %30 = arith.addf %28, %29 : vector<16x128xf32>
    %c0_11 = arith.constant 0 : index
    %c0_12 = arith.constant 0 : index
    %31 = vector.load %arg2[%c0_11, %c0_12] : memref<16x16xbf16, #tpu.memory_space<vmem>>, vector<16x16xbf16>
    %c0_13 = arith.constant 0 : index
    %c0_14 = arith.constant 0 : index
    %32 = vector.load %arg4[%c0_13, %c0_14] : memref<16x128xbf16, #tpu.memory_space<vmem>>, vector<16x128xbf16>
    %cst_15 = arith.constant dense<0.000000e+00> : vector<16x128xf32>
    %33 = tpu.matmul %31, %32, %cst_15 {dimension_numbers = #tpu.dot_dimension_numbers<[1], [0], [0], [1], [0, 0, 1, 1], [], []>} : vector<16x16xbf16>, vector<16x128xbf16>, vector<16x128xf32> -> vector<16x128xf32>
    %34 = vector.extract_strided_slice %0 {offsets = [1, 0], sizes = [1, 128], strides = [1, 1]} : vector<4x128xf32> to vector<1x128xf32>
    %35 = vector.broadcast %34 : vector<1x128xf32> to vector<16x128xf32>
    %36 = arith.addf %33, %35 : vector<16x128xf32>
    %cst_16 = arith.constant 0.000000e+00 : f32
    %37 = vector.broadcast %cst_16 : f32 to vector<16x128xf32>
    %38 = arith.maximumf %36, %37 : vector<16x128xf32>
    %39 = arith.addf %30, %38 : vector<16x128xf32>
    %40 = arith.truncf %39 : vector<16x128xf32> to vector<16x128xbf16>
    %c0_17 = arith.constant 0 : index
    %c0_18 = arith.constant 0 : index
    %41 = vector.load %arg6[%c0_17, %c0_18] : memref<16x128xbf16, #tpu.memory_space<vmem>>, vector<16x128xbf16>
    tpu.vector_store %arg6[%c0_17, %c0_18], %40 {strides = array<i32>} : memref<16x128xbf16, #tpu.memory_space<vmem>>, vector<16x128xbf16>,
    return
  }
  func.func @transform_0(%arg0: i32) -> (i32, i32) {
    %c0_i32 = arith.constant 0 : i32
    %c0_i32_0 = arith.constant 0 : i32
    %c0_i32_1 = arith.constant 0 : i32
    return %c0_i32, %c0_i32_0 : i32, i32
  }
  func.func @transform_1(%arg0: i32) -> (i32, i32) {
    %c0_i32 = arith.constant 0 : i32
    %c0_i32_0 = arith.constant 0 : i32
    %c0_i32_1 = arith.constant 0 : i32
    return %c0_i32, %c0_i32_0 : i32, i32
  }
  func.func @transform_2(%arg0: i32) -> (i32, i32) {
    %c0_i32 = arith.constant 0 : i32
    %c0_i32_0 = arith.constant 0 : i32
    return %c0_i32, %arg0 : i32, i32
  }
  func.func @transform_3(%arg0: i32) -> (i32, i32) {
    %c0_i32 = arith.constant 0 : i32
    %c0_i32_0 = arith.constant 0 : i32
    return %c0_i32, %arg0 : i32, i32
  }
  func.func @transform_4(%arg0: i32) -> (i32, i32) {
    %c0_i32 = arith.constant 0 : i32
    %c0_i32_0 = arith.constant 0 : i32
    return %c0_i32, %arg0 : i32, i32
  }
  func.func @transform_5(%arg0: i32) -> (i32, i32) {
    %c0_i32 = arith.constant 0 : i32
    %c0_i32_0 = arith.constant 0 : i32
    return %c0_i32, %arg0 : i32, i32
  }
}

</mosaic_0001>

<llo_original>
// kernel: tpu_custom_call.1
$region0: #{tpu_custom_call.1}
  #allocation0 [shape = 'u32[]', space=smem, size = 0x4, offset = 0x4, fixed_abs, tag = 'smem constant byte address 0x4 - core index']
  #allocation1 [shape = 'u32[144,128]{1,0:T(1,128)}', space=vmem, size = 0x12000, scoped, tag = 'internal scratch']
  %s0 = inlined_call_operand.hbm [shape: bf16[16,32], index: 0, kind: input, shape index: {}]
  %s1 = inlined_call_operand.hbm [shape: bf16[16,16], index: 1, kind: input, shape index: {}]
  %s2 = inlined_call_operand.hbm [shape: bf16[32,256], index: 2, kind: input, shape index: {}]
  %s3 = inlined_call_operand.hbm [shape: bf16[16,256], index: 3, kind: input, shape index: {}]
  %s4 = inlined_call_operand.hbm [shape: f32[4,256], index: 4, kind: input, shape index: {}]
  %s5 = inlined_call_operand.hbm [shape: bf16[16,256], index: 5, kind: output, shape index: {}]
  %s6 = sld [smem:[#allocation0]]
  $region73: #{tpu_custom_call.1} parent=0
    _
  %s8 = ssub.s32 1, %s6
  %s9 = scalar_select 0, %s8, %s6
  $region1: #{tpu_custom_call.1} parent=0
    #allocation2 [shape = 'u8[4096]{0}', space=vmem, size = 0x1000, scoped, tag = 'input window, operand 0, single buffered']
    #allocation3 [shape = 's32[2]{0}', space=sflag, size = 0x8, scoped, tag = 'scoped memory for tpu_custom_call.1']
    #allocation4 [shape = 's32[2]{0}', space=sflag, size = 0x8, scoped, tag = 'scoped memory for tpu_custom_call.1']
    #allocation5 [shape = 'u8[4096]{0}', space=vmem, size = 0x1000, scoped, tag = 'input window, operand 1, single buffered']
    #allocation6 [shape = 's32[1]{0}', space=sflag, size = 0x4, scoped, tag = 'scoped memory for tpu_custom_call.1']
    #allocation7 [shape = 'u8[16384]{0}', space=vmem, size = 0x4000, scoped, tag = 'input window, operand 2']
    #allocation8 [shape = 'u8[8192]{0}', space=vmem, size = 0x2000, scoped, tag = 'input window, operand 3']
    #allocation9 [shape = 'u8[4096]{0}', space=vmem, size = 0x1000, scoped, tag = 'input window, operand 4']
    #allocation10 [shape = 'u8[8192]{0}', space=vmem, size = 0x2000, scoped, tag = 'output window, operand 0']
    %10 = vsyncpa [#allocation3], 0
    %11 = vsyncpa [#allocation6], 0
    %12 = vsyncpa [#allocation4], 0
    %s13 = scalar_lea.sflag [#allocation4], 1
    %14 = vsyncpa %s13, 0
    loop: start=0, step=1, limit=4
    $region2: #{tpu_custom_call.1} parent=1 // loop_pre_header
      _
    $region3: #{tpu_custom_call.1} parent=1 // loop_header
      %s16 = sphi 0, %s20
      %p17 = scmp.ge.s32.totalorder %s16, 4
      %s24 = sphi 0, %s24
      %s26 = sphi 0, %s24
      %s27 = sphi 0, %s26
      %s41 = sphi 0, %s27
      %s45 = sphi 0, %s45
      %s47 = sphi 0, %s45
      %s48 = sphi 0, %s47
      %s62 = sphi 0, %s48
      %s68 = sphi 0, %s70
      %s71 = sphi 0, %s68
      %s72 = sphi 0, %s71
      %s88 = sphi 0, %s72
      %s94 = sphi 0, %s96
      %s97 = sphi 0, %s94
      %s98 = sphi 0, %s97
      %s114 = sphi 0, %s98
      %s120 = sphi 0, %s122
      %s123 = sphi 0, %s120
      %s124 = sphi 0, %s123
      %s140 = sphi 0, %s124
      %s146 = sphi 0, %s148
      %s149 = sphi 0, %s146
      %s150 = sphi 0, %s149
      %s166 = sphi 0, %s150
    $region4: #{tpu_custom_call.1} parent=1 // loop_header_branch
      %19 = sbr.rel (%p17) target = $region8
    $region5: #{tpu_custom_call.1} parent=1 // loop_body
      %s21 = ssub.s32 %s16, 1
      %s22 = ssub.s32 %s16, 2
      %s23 = sadd.s32 %s16, 1
      %s25 = sadd.s32 %s24, 1
      %p28 = scmp.eq.s32.totalorder %s16, 1
      %p29 = scmp.ne.s32.totalorder %s24, %s26
      %p30 = scmp.eq.s32.totalorder %s16, 0
      %p31 = por %p29, %p30
      %p32 = scmp.ne.s32.totalorder %s24, %s26
      %p33 = scmp.eq.s32.totalorder %s21, 1
      %p34 = por %p32, %p33
      %p35 = scmp.ne.s32.totalorder %s26, %s27
      %p36 = scmp.eq.s32.totalorder %s21, 0
      %p37 = por %p35, %p36
      %p38 = scmp.ne.s32.totalorder %s26, %s27
      %p39 = scmp.eq.s32.totalorder %s22, 1
      %p40 = por %p38, %p39
      %p42 = scmp.ne.s32.totalorder %s27, %s41
      %p43 = scmp.eq.s32.totalorder %s22, 0
      %p44 = por %p42, %p43
      %s46 = sadd.s32 %s45, 1
      %p49 = scmp.eq.s32.totalorder %s16, 1
      %p50 = scmp.ne.s32.totalorder %s45, %s47
      %p51 = scmp.eq.s32.totalorder %s16, 0
      %p52 = por %p50, %p51
      %p53 = scmp.ne.s32.totalorder %s45, %s47
      %p54 = scmp.eq.s32.totalorder %s21, 1
      %p55 = por %p53, %p54
      %p56 = scmp.ne.s32.totalorder %s47, %s48
      %p57 = scmp.eq.s32.totalorder %s21, 0
      %p58 = por %p56, %p57
      %p59 = scmp.ne.s32.totalorder %s47, %s48
      %p60 = scmp.eq.s32.totalorder %s22, 1
      %p61 = por %p59, %p60
      %p63 = scmp.ne.s32.totalorder %s48, %s62
      %p64 = scmp.eq.s32.totalorder %s22, 0
      %p65 = por %p63, %p64
      %s66 = ssub.s32 %s16, %s23
      %p67 = scmp.eq.s32.totalorder %s66, 0
      %s69 = sadd.s32 %s68, 1
      %s70 = scalar_select %p67, %s68, %s69
      %p73 = pneg %p67
      %p74 = scmp.eq.s32.totalorder %s16, 1
      %p75 = por %p73, %p74
      %p76 = scmp.ne.s32.totalorder %s68, %s71
      %p77 = scmp.eq.s32.totalorder %s16, 0
      %p78 = por %p76, %p77
      %p79 = scmp.ne.s32.totalorder %s68, %s71
      %p80 = scmp.eq.s32.totalorder %s21, 1
      %p81 = por %p79, %p80
      %p82 = scmp.ne.s32.totalorder %s71, %s72
      %p83 = scmp.eq.s32.totalorder %s21, 0
      %p84 = por %p82, %p83
      %p85 = scmp.ne.s32.totalorder %s71, %s72
      %p86 = scmp.eq.s32.totalorder %s22, 1
      %p87 = por %p85, %p86
      %p89 = scmp.ne.s32.totalorder %s72, %s88
      %p90 = scmp.eq.s32.totalorder %s22, 0
      %p91 = por %p89, %p90
      %s92 = ssub.s32 %s16, %s23
      %p93 = scmp.eq.s32.totalorder %s92, 0
      %s95 = sadd.s32 %s94, 1
      %s96 = scalar_select %p93, %s94, %s95
      %p99 = pneg %p93
      %p100 = scmp.eq.s32.totalorder %s16, 1
      %p101 = por %p99, %p100
      %p102 = scmp.ne.s32.totalorder %s94, %s97
      %p103 = scmp.eq.s32.totalorder %s16, 0
      %p104 = por %p102, %p103
      %p105 = scmp.ne.s32.totalorder %s94, %s97
      %p106 = scmp.eq.s32.totalorder %s21, 1
      %p107 = por %p105, %p106
      %p108 = scmp.ne.s32.totalorder %s97, %s98
      %p109 = scmp.eq.s32.totalorder %s21, 0
      %p110 = por %p108, %p109
      %p111 = scmp.ne.s32.totalorder %s97, %s98
      %p112 = scmp.eq.s32.totalorder %s22, 1
      %p113 = por %p111, %p112
      %p115 = scmp.ne.s32.totalorder %s98, %s114
      %p116 = scmp.eq.s32.totalorder %s22, 0
      %p117 = por %p115, %p116
      %s118 = ssub.s32 %s16, %s23
      %p119 = scmp.eq.s32.totalorder %s118, 0
      %s121 = sadd.s32 %s120, 1
      %s122 = scalar_select %p119, %s120, %s121
      %p125 = pneg %p119
      %p126 = scmp.eq.s32.totalorder %s16, 1
      %p127 = por %p125, %p126
      %p128 = scmp.ne.s32.totalorder %s120, %s123
      %p129 = scmp.eq.s32.totalorder %s16, 0
      %p130 = por %p128, %p129
      %p131 = scmp.ne.s32.totalorder %s120, %s123
      %p132 = scmp.eq.s32.totalorder %s21, 1
      %p133 = por %p131, %p132
      %p134 = scmp.ne.s32.totalorder %s123, %s124
      %p135 = scmp.eq.s32.totalorder %s21, 0
      %p136 = por %p134, %p135
      %p137 = scmp.ne.s32.totalorder %s123, %s124
      %p138 = scmp.eq.s32.totalorder %s22, 1
      %p139 = por %p137, %p138
      %p141 = scmp.ne.s32.totalorder %s124, %s140
      %p142 = scmp.eq.s32.totalorder %s22, 0
      %p143 = por %p141, %p142
      %s144 = ssub.s32 %s16, %s23
      %p145 = scmp.eq.s32.totalorder %s144, 0
      %s147 = sadd.s32 %s146, 1
      %s148 = scalar_select %p145, %s146, %s147
      %p151 = pneg %p145
      %p152 = scmp.eq.s32.totalorder %s16, 1
      %p153 = por %p151, %p152
      %p154 = scmp.ne.s32.totalorder %s146, %s149
      %p155 = scmp.eq.s32.totalorder %s16, 0
      %p156 = por %p154, %p155
      %p157 = scmp.ne.s32.totalorder %s146, %s149
      %p158 = scmp.eq.s32.totalorder %s21, 1
      %p159 = por %p157, %p158
      %p160 = scmp.ne.s32.totalorder %s149, %s150
      %p161 = scmp.eq.s32.totalorder %s21, 0
      %p162 = por %p160, %p161
      %p163 = scmp.ne.s32.totalorder %s149, %s150
      %p164 = scmp.eq.s32.totalorder %s22, 1
      %p165 = por %p163, %p164
      %p167 = scmp.ne.s32.totalorder %s150, %s166
      %p168 = scmp.eq.s32.totalorder %s22, 0
      %p169 = por %p167, %p168
      %p170 = scmp.le.s32.totalorder 1, %s16
      %p171 = scmp.lt.s32.totalorder %s16, 3
      %p172 = pnand %p170, %p171
      %p173 = pneg %p172
      // Predicated region
      $region9: #{tpu_custom_call.1} parent=5 // pred_check
        _
      $region10: #{tpu_custom_call.1} parent=5 // pred_check_branch
        %175 = sbr.rel (%p172) target = $region12
      $region11: #{tpu_custom_call.1} parent=5 // pred_region
        %s176 = ssub.s32 %s16, 1
        // Predicated region
        $region13: #{tpu_custom_call.1} parent=11 // pred_check
          %p177 = pneg %p37
        $region14: #{tpu_custom_call.1} parent=11 // pred_check_branch
          %179 = sbr.rel (%p177) target = $region16
        $region15: #{tpu_custom_call.1} parent=11 // pred_region
          %s181 = ssub.s32 128, 128
          %182 = vsyncadd [#allocation3], %s181
          %s183 = sshll.u32 [#allocation2], 4
          %s184 = int_to_ptr.vmem [resolvable:$true] %s183
          %189 = dma.hbm_to_vmem [thread:$0]  %s0, 128, %s184, [#allocation3], 64, 64, 4
        $region16: #{tpu_custom_call.1} parent=11 // pred_fallthru
          _
        // Predicated region
        $region17: #{tpu_custom_call.1} parent=11 // pred_check
          %p190 = pneg %p58
        $region18: #{tpu_custom_call.1} parent=11 // pred_check_branch
          %192 = sbr.rel (%p190) target = $region20
        $region19: #{tpu_custom_call.1} parent=11 // pred_region
          %s194 = ssub.s32 128, 128
          %195 = vsyncadd [#allocation6], %s194
          %s196 = sshll.u32 [#allocation5], 4
          %s197 = int_to_ptr.vmem [resolvable:$true] %s196
          %202 = dma.hbm_to_vmem [thread:$0]  %s1, 128, %s197, [#allocation6], 64, 64, 4
        $region20: #{tpu_custom_call.1} parent=11 // pred_fallthru
          _
      $region12: #{tpu_custom_call.1} parent=5 // pred_fallthru
        _
      %p203 = scmp.lt.s32.totalorder %s16, 2
      // Predicated region
      $region21: #{tpu_custom_call.1} parent=5 // pred_check
        %p204 = pneg %p203
      $region22: #{tpu_custom_call.1} parent=5 // pred_check_branch
        %206 = sbr.rel (%p204) target = $region24
      $region23: #{tpu_custom_call.1} parent=5 // pred_region
        // Predicated region
        $region25: #{tpu_custom_call.1} parent=23 // pred_check
          %p207 = pneg %p78
        $region26: #{tpu_custom_call.1} parent=23 // pred_check_branch
          %209 = sbr.rel (%p207) target = $region28
        $region27: #{tpu_custom_call.1} parent=23 // pred_region
          %s210 = sand.u32 %s16, 1
          %s211 = scalar_lea.sflag [#allocation3], %s210
          %s212 = sand.u32 %s68, 1
          %s213 = smul.addr %s212, 16
          %s214 = scalar_lea.vmem [#allocation7], %s213
          %s216 = ssub.s32 256, 256
          %217 = vsyncadd %s211, %s216
          %s218 = smul.addr %s16, 64
          %s219 = scalar_lea.hbm %s2, %s218
          %s220 = sshll.u32 %s214, 4
          %s221 = int_to_ptr.vmem [resolvable:$true] %s220
          %226 = dma.hbm_to_vmem [thread:$0]  %s219, 256, %s221, %s211, 128, 64, 4
        $region28: #{tpu_custom_call.1} parent=23 // pred_fallthru
          _
        // Predicated region
        $region29: #{tpu_custom_call.1} parent=23 // pred_check
          %p227 = pneg %p104
        $region30: #{tpu_custom_call.1} parent=23 // pred_check_branch
          %229 = sbr.rel (%p227) target = $region32
        $region31: #{tpu_custom_call.1} parent=23 // pred_region
          %s230 = sand.u32 %s16, 1
          %s231 = scalar_lea.sflag [#allocation3], %s230
          %s232 = sand.u32 %s94, 1
          %s233 = smul.addr %s232, 8
          %s234 = scalar_lea.vmem [#allocation8], %s233
          %s236 = ssub.s32 128, 128
          %237 = vsyncadd %s231, %s236
          %s238 = smul.addr %s16, 64
          %s239 = scalar_lea.hbm %s3, %s238
          %s240 = sshll.u32 %s234, 4
          %s241 = int_to_ptr.vmem [resolvable:$true] %s240
          %246 = dma.hbm_to_vmem [thread:$0]  %s239, 128, %s241, %s231, 128, 64, 4
        $region32: #{tpu_custom_call.1} parent=23 // pred_fallthru
          _
        // Predicated region
        $region33: #{tpu_custom_call.1} parent=23 // pred_check
          %p247 = pneg %p130
        $region34: #{tpu_custom_call.1} parent=23 // pred_check_branch
          %249 = sbr.rel (%p247) target = $region36
        $region35: #{tpu_custom_call.1} parent=23 // pred_region
          %s250 = sand.u32 %s16, 1
          %s251 = scalar_lea.sflag [#allocation3], %s250
          %s252 = sand.u32 %s120, 1
          %s253 = smul.addr %s252, 4
          %s254 = scalar_lea.vmem [#allocation9], %s253
          %s256 = ssub.s32 64, 64
          %257 = vsyncadd %s251, %s256
          %s258 = smul.addr %s16, 64
          %s259 = scalar_lea.hbm %s4, %s258
          %s261 = sshll.u32 %s254, 4
          %s262 = int_to_ptr.vmem [resolvable:$true] %s261
          %264 = dma.hbm_to_vmem [thread:$0]  %s259, 64, %s262, %s251
        $region36: #{tpu_custom_call.1} parent=23 // pred_fallthru
          _
      $region24: #{tpu_custom_call.1} parent=5 // pred_fallthru
        _
      %p265 = scmp.le.s32.totalorder 1, %s16
      %p266 = scmp.lt.s32.totalorder %s16, 3
      %p267 = pnand %p265, %p266
      %p268 = pneg %p267
      // Predicated region
      $region37: #{tpu_custom_call.1} parent=5 // pred_check
        _
      $region38: #{tpu_custom_call.1} parent=5 // pred_check_branch
        %270 = sbr.rel (%p267) target = $region40
      $region39: #{tpu_custom_call.1} parent=5 // pred_region
        %s271 = ssub.s32 %s16, 1
        // Predicated region
        $region41: #{tpu_custom_call.1} parent=39 // pred_check
          %p272 = pneg %p37
        $region42: #{tpu_custom_call.1} parent=39 // pred_check_branch
          %274 = sbr.rel (%p272) target = $region44
        $region43: #{tpu_custom_call.1} parent=39 // pred_region
          %275 = dma.done [#allocation3], 128
        $region44: #{tpu_custom_call.1} parent=39 // pred_fallthru
          _
        // Predicated region
        $region45: #{tpu_custom_call.1} parent=39 // pred_check
          %p276 = pneg %p58
        $region46: #{tpu_custom_call.1} parent=39 // pred_check_branch
          %278 = sbr.rel (%p276) target = $region48
        $region47: #{tpu_custom_call.1} parent=39 // pred_region
          %279 = dma.done [#allocation6], 128
        $region48: #{tpu_custom_call.1} parent=39 // pred_fallthru
          _
        %s280 = sand.u32 %s21, 1
        %s281 = scalar_lea.sflag [#allocation3], %s280
        %s282 = sand.u32 %s71, 1
        %s283 = smul.addr %s282, 16
        %s284 = scalar_lea.vmem [#allocation7], %s283
        // Predicated region
        $region49: #{tpu_custom_call.1} parent=39 // pred_check
          %p285 = pneg %p84
        $region50: #{tpu_custom_call.1} parent=39 // pred_check_branch
          %287 = sbr.rel (%p285) target = $region52
        $region51: #{tpu_custom_call.1} parent=39 // pred_region
          %288 = dma.done %s281, 256
        $region52: #{tpu_custom_call.1} parent=39 // pred_fallthru
          _
        %s289 = sand.u32 %s21, 1
        %s290 = scalar_lea.sflag [#allocation3], %s289
        %s291 = sand.u32 %s97, 1
        %s292 = smul.addr %s291, 8
        %s293 = scalar_lea.vmem [#allocation8], %s292
        // Predicated region
        $region53: #{tpu_custom_call.1} parent=39 // pred_check
          %p294 = pneg %p110
        $region54: #{tpu_custom_call.1} parent=39 // pred_check_branch
          %296 = sbr.rel (%p294) target = $region56
        $region55: #{tpu_custom_call.1} parent=39 // pred_region
          %297 = dma.done %s290, 128
        $region56: #{tpu_custom_call.1} parent=39 // pred_fallthru
          _
        %s298 = sand.u32 %s21, 1
        %s299 = scalar_lea.sflag [#allocation3], %s298
        %s300 = sand.u32 %s123, 1
        %s301 = smul.addr %s300, 4
        %s302 = scalar_lea.vmem [#allocation9], %s301
        // Predicated region
        $region57: #{tpu_custom_call.1} parent=39 // pred_check
          %p303 = pneg %p136
        $region58: #{tpu_custom_call.1} parent=39 // pred_check_branch
          %305 = sbr.rel (%p303) target = $region60
        $region59: #{tpu_custom_call.1} parent=39 // pred_region
          %306 = dma.done %s299, 64
        $region60: #{tpu_custom_call.1} parent=39 // pred_fallthru
          _
        %p307 = pneg %p37
        %p308 = pneg %p34
        %p309 = pneg %p58
        %p310 = pneg %p55
        %s311 = sand.u32 %s21, 1
        %s312 = scalar_lea.sflag [#allocation3], %s311
        %s313 = sand.u32 %s71, 1
        %s314 = smul.addr %s313, 16
        %s315 = scalar_lea.vmem [#allocation7], %s314
        %p316 = pneg %p84
        %p317 = pneg %p81
        %s318 = sand.u32 %s21, 1
        %s319 = scalar_lea.sflag [#allocation3], %s318
        %s320 = sand.u32 %s97, 1
        %s321 = smul.addr %s320, 8
        %s322 = scalar_lea.vmem [#allocation8], %s321
        %p323 = pneg %p110
        %p324 = pneg %p107
        %s325 = sand.u32 %s21, 1
        %s326 = scalar_lea.sflag [#allocation3], %s325
        %s327 = sand.u32 %s123, 1
        %s328 = smul.addr %s327, 4
        %s329 = scalar_lea.vmem [#allocation9], %s328
        %p330 = pneg %p136
        %p331 = pneg %p133
        %p332 = pneg %p162
        %p333 = pneg %p159
        %s334 = sand.u32 %s149, 1
        %s335 = scalar_lea.sflag [#allocation4], %s334
        %s336 = sand.u32 %s149, 1
        %s337 = smul.addr %s336, 8
        %s338 = scalar_lea.vmem [#allocation10], %s337
        %v340 = vld [vmem:[%s302] sm:$0xf]
        %v341 = vld [vmem:[#allocation2] sm:$0xf]
        %v342 = vld [vmem:[#allocation2 + $0x4] sm:$0xf]
        %v343 = vld [vmem:[%s284] sm:$0xf]
        %v344 = vld [vmem:[%s284 + $0x4] sm:$0xf]
        %v345 = vld [vmem:[%s284 + $0x8] sm:$0xf]
        %v346 = vld [vmem:[%s284 + $0xc] sm:$0xf]
        %v347 = vlaneseq
        %v348 = vshrl.u32 %v347, 7
        %v349 = vsub.s32 0, %v348
        %v350 = vrot.slane %v340, %v349
        %v353 = vunpack.c.l.b16 %v341
        %v354 = vunpack.c.l.b16 %v342
        %v355 = vpack.c.b16 %v354, %v353
        %v360 = vunpack.c.l.b16 %v343
        %v361 = vunpack.c.l.b16 %v344
        %v362 = vunpack.c.l.b16 %v345
        %v363 = vunpack.c.l.b16 %v346
        %v364 = vpack.c.b16 %v361, %v360
        %v365 = vpack.c.b16 %v363, %v362
        %vm368 = vcmask 261120
        %v370 = vsel %vm368, %v355, 0
        %372 = vmatprep.subr.bf16.mxu0 0
        %373 = vmatpush1.bf16.msra.mxu0 %v364
        %374 = vmatprep.subr.bf16.mxu0 0
        %375 = vmatpush1.bf16.msra.mxu0 %v365
        %376 = vmatprep.subr.bf16.mxu0 0
        %377 = vmatpush1.bf16.msra.mxu0 0
        %378 = vmatprep.subr.bf16.mxu0 0
        %379 = vmatpush1.bf16.msra.mxu0 0
        %380 = vmatprep.subr.bf16.mxu0 0
        %381 = vmatpush1.bf16.msra.mxu0 0
        %382 = vmatprep.subr.bf16.mxu0 0
        %383 = vmatpush1.bf16.msra.mxu0 0
        %384 = vmatprep.subr.bf16.mxu0 0
        %385 = vmatpush1.bf16.msra.mxu0 0
        %386 = vmatprep.subr.bf16.mxu0 0
        %387 = vmatpush1.bf16.msra.mxu0 0
        %388 = vmatprep.subr.bf16.mxu0 0
        %389 = vmatpush1.bf16.msra.mxu0 0
        %390 = vmatprep.subr.bf16.mxu0 0
        %391 = vmatpush1.bf16.msra.mxu0 0
        %392 = vmatprep.subr.bf16.mxu0 0
        %393 = vmatpush1.bf16.msra.mxu0 0
        %394 = vmatprep.subr.bf16.mxu0 0
        %395 = vmatpush1.bf16.msra.mxu0 0
        %396 = vmatprep.subr.bf16.mxu0 0
        %397 = vmatpush1.bf16.msra.mxu0 0
        %398 = vmatprep.subr.bf16.mxu0 0
        %399 = vmatpush1.bf16.msra.mxu0 0
        %400 = vmatprep.subr.bf16.mxu0 0
        %401 = vmatpush1.bf16.msra.mxu0 0
        %402 = vmatprep.subr.bf16.mxu0 0
        %403 = vmatpush1.bf16.msra.mxu0 0
        %404 = vmatprep.mubr.bf16.mxu0 0
        %405 = vmatmul.mubr.bf16.gmra.mrb[0].mxu0 %v370
        %v406 = vpop.f32.mrb[0].mxu0
        %v407 = vadd.f32 %v350, %v406
        %v408 = vpop.f32.mrb[0].mxu0
        %v409 = vpop.f32.mrb[0].mxu0
        %v410 = vadd.f32 %v350, %v409
        %v411 = vpop.f32.mrb[0].mxu0
        %412 = vdwg.mxu0
        %v413 = vmax.f32 %v407, 0.0
        %v414 = vmax.f32 %v410, 0.0
        %v415 = vadd.f32 %v413, %v414
        %v416 = vrot.slane %v415, 4
        %v417 = vadd.f32 %v415, %v416
        %v418 = vrot.slane %v417, 2
        %v419 = vadd.f32 %v417, %v418
        %v420 = vrot.slane %v419, 1
        %v421 = vadd.f32 %v419, %v420
        %v422 = vrcp.pop 16.0
        %v423 = vmul.f32 %v421, %v422
        %v424 = vsub.f32 %v413, %v423
        %v425 = vsub.f32 %v414, %v423
        %v426 = vmul.f32 %v424, %v424
        %v427 = vmul.f32 %v425, %v425
        %v428 = vadd.f32 %v426, %v427
        %v429 = vrot.slane %v428, 4
        %v430 = vadd.f32 %v428, %v429
        %v431 = vrot.slane %v430, 2
        %v432 = vadd.f32 %v430, %v431
        %v433 = vrot.slane %v432, 1
        %v434 = vadd.f32 %v432, %v433
        %v435 = vmul.f32 %v434, %v422
        %v436 = vadd.f32 %v435, 1e-05
        %v437 = vrsqrt.pop %v436
        %v438 = vmul.f32 %v424, %v437
        %v439 = vmul.f32 %v425, %v437
        %v440 = vlaneseq
        %v441 = vshrl.u32 %v440, 7
        %v442 = vsub.s32 2, %v441
        %v443 = vrot.slane %v340, %v442
        %v444 = vmul.f32 %v438, %v443
        %v445 = vmul.f32 %v439, %v443
        %v446 = vlaneseq
        %v447 = vshrl.u32 %v446, 7
        %v448 = vsub.s32 3, %v447
        %v449 = vrot.slane %v340, %v448
        %v450 = vadd.f32 %v444, %v449
        %v451 = vadd.f32 %v445, %v449
        %v452 = vld [vmem:[#allocation5] sm:$0xf]
        %v453 = vld [vmem:[#allocation5 + $0x4] sm:$0xf]
        %v454 = vld [vmem:[%s293] sm:$0xf]
        %v455 = vld [vmem:[%s293 + $0x4] sm:$0xf]
        %v456 = vlaneseq
        %v457 = vshrl.u32 %v456, 7
        %v458 = vsub.s32 1, %v457
        %v459 = vrot.slane %v340, %v458
        %v462 = vunpack.c.l.b16 %v452
        %v463 = vunpack.c.l.b16 %v453
        %v464 = vpack.c.b16 %v463, %v462
        %v467 = vunpack.c.l.b16 %v454
        %v468 = vunpack.c.l.b16 %v455
        %v469 = vpack.c.b16 %v468, %v467
        %vm471 = vcmask 130048
        %v473 = vsel %vm471, %v464, 0
        %475 = vmatprep.subr.bf16.mxu0 0
        %476 = vmatpush1.bf16.msra.mxu0 %v469
        %477 = vmatprep.subr.bf16.mxu0 0
        %478 = vmatpush1.bf16.msra.mxu0 0
        %479 = vmatprep.subr.bf16.mxu0 0
        %480 = vmatpush1.bf16.msra.mxu0 0
        %481 = vmatprep.subr.bf16.mxu0 0
        %482 = vmatpush1.bf16.msra.mxu0 0
        %483 = vmatprep.subr.bf16.mxu0 0
        %484 = vmatpush1.bf16.msra.mxu0 0
        %485 = vmatprep.subr.bf16.mxu0 0
        %486 = vmatpush1.bf16.msra.mxu0 0
        %487 = vmatprep.subr.bf16.mxu0 0
        %488 = vmatpush1.bf16.msra.mxu0 0
        %489 = vmatprep.subr.bf16.mxu0 0
        %490 = vmatpush1.bf16.msra.mxu0 0
        %491 = vmatprep.subr.bf16.mxu0 0
        %492 = vmatpush1.bf16.msra.mxu0 0
        %493 = vmatprep.subr.bf16.mxu0 0
        %494 = vmatpush1.bf16.msra.mxu0 0
        %495 = vmatprep.subr.bf16.mxu0 0
        %496 = vmatpush1.bf16.msra.mxu0 0
        %497 = vmatprep.subr.bf16.mxu0 0
        %498 = vmatpush1.bf16.msra.mxu0 0
        %499 = vmatprep.subr.bf16.mxu0 0
        %500 = vmatpush1.bf16.msra.mxu0 0
        %501 = vmatprep.subr.bf16.mxu0 0
        %502 = vmatpush1.bf16.msra.mxu0 0
        %503 = vmatprep.subr.bf16.mxu0 0
        %504 = vmatpush1.bf16.msra.mxu0 0
        %505 = vmatprep.subr.bf16.mxu0 0
        %506 = vmatpush1.bf16.msra.mxu0 0
        %507 = vmatprep.mubr.bf16.mxu0 0
        %508 = vmatmul.mubr.bf16.gmra.mrb[0].mxu0 %v473
        %v509 = vpop.f32.mrb[0].mxu0
        %v510 = vadd.f32 %v459, %v509
        %v511 = vpop.f32.mrb[0].mxu0
        %v512 = vpop.f32.mrb[0].mxu0
        %v513 = vadd.f32 %v459, %v512
        %v514 = vpop.f32.mrb[0].mxu0
        %515 = vdwg.mxu0
        %v516 = vmax.f32 %v510, 0.0
        %v517 = vmax.f32 %v513, 0.0
        %v518 = vadd.f32 %v450, %v516
        %v519 = vadd.f32 %v451, %v517
        %v520 = vpack.c.bf16 %v519, %v518
        %v522 = vunpack.c.l.b16 %v520
        %v523 = vunpack.c.h.b16 %v520
        %v524 = vpack.c.b16 %v522, %v522
        %v525 = vpack.c.b16 %v523, %v523
        %528 = vst [vmem:[%s338] sm:$0xf] %v524
        %529 = vst [vmem:[%s338 + $0x4] sm:$0xf] %v525
        %s530 = sand.u32 %s149, 1
        %s531 = scalar_lea.sflag [#allocation4], %s530
        %s532 = sand.u32 %s149, 1
        %s533 = smul.addr %s532, 8
        %s534 = scalar_lea.vmem [#allocation10], %s533
        // Predicated region
        $region61: #{tpu_custom_call.1} parent=39 // pred_check
          %p535 = pneg %p159
        $region62: #{tpu_custom_call.1} parent=39 // pred_check_branch
          %537 = sbr.rel (%p535) target = $region64
        $region63: #{tpu_custom_call.1} parent=39 // pred_region
          %s539 = ssub.s32 128, 128
          %540 = vsyncadd %s531, %s539
          %s541 = smul.addr %s21, 64
          %s542 = scalar_lea.hbm %s5, %s541
          %s543 = sshll.u32 %s534, 4
          %s544 = int_to_ptr.vmem [resolvable:$true] %s543
          %549 = dma.vmem_to_hbm [thread:$0]  %s544, 128, %s542, %s531, 64, 128, 4
        $region64: #{tpu_custom_call.1} parent=39 // pred_fallthru
          _
      $region40: #{tpu_custom_call.1} parent=5 // pred_fallthru
        _
      %p550 = scmp.le.s32.totalorder 2, %s16
      // Predicated region
      $region65: #{tpu_custom_call.1} parent=5 // pred_check
        %p551 = pneg %p550
      $region66: #{tpu_custom_call.1} parent=5 // pred_check_branch
        %553 = sbr.rel (%p551) target = $region68
      $region67: #{tpu_custom_call.1} parent=5 // pred_region
        %s554 = ssub.s32 %s16, 2
        // Predicated region
        $region69: #{tpu_custom_call.1} parent=67 // pred_check
          %p555 = pneg %p165
        $region70: #{tpu_custom_call.1} parent=67 // pred_check_branch
          %557 = sbr.rel (%p555) target = $region72
        $region71: #{tpu_custom_call.1} parent=67 // pred_region
          %s558 = sand.u32 %s150, 1
          %s559 = scalar_lea.sflag [#allocation4], %s558
          %s560 = sand.u32 %s150, 1
          %s561 = smul.addr %s560, 8
          %s562 = scalar_lea.vmem [#allocation10], %s561
          %563 = dma.done %s559, 128
        $region72: #{tpu_custom_call.1} parent=67 // pred_fallthru
          _
      $region68: #{tpu_custom_call.1} parent=5 // pred_fallthru
        _
    $region6: #{tpu_custom_call.1} parent=1 // loop_footer
      %s20 = sadd.s32 1, %s16
    $region7: #{tpu_custom_call.1} parent=1 // loop_footer_branch
      %15 = sbr.rel target = $region3
    $region8: #{tpu_custom_call.1} parent=1 // loop_exit
      _
    %564 = vsyncpa [#allocation3], 1
    %s565 = scalar_lea.sflag [#allocation3], 1
    %566 = vsyncpa %s565, 1
    %567 = vsyncpa [#allocation6], 1
    %568 = vsyncpa [#allocation4], 1
    %s569 = scalar_lea.sflag [#allocation4], 1
    %570 = vsyncpa %s569, 1

</llo_original>
